<compile_context>
chip_gen: v5e
topology: v5e:2x2
jax: 0.10.0
libtpu: 0.0.40
codegen_flags: <defaults>
</compile_context>

<pallas_src>
import jax
import jax.numpy as jnp
from jax.experimental import pallas as pl
from jax.experimental.pallas import tpu as pltpu

EPS = 1e-05
_VMEM_BUDGET = 8 << 20  # per-step working-set budget (conservative for v7x)


def _largest_divisor(n, cap):
    """Largest divisor of n that is <= cap (>=1)."""
    cap = int(max(1, min(cap, n)))
    for d in range(cap, 0, -1):
        if n % d == 0:
            return d
    return 1


def _choose_blocks(batch, rows, extra_rows, feat, min_steps=2):
    """Pick (batch_block, feat_block).

    Keeps the double-buffered per-step footprint under _VMEM_BUDGET and leaves
    >= min_steps grid steps when possible so both TensorCores stay busy."""
    if feat % 128 == 0 and feat > 1024:
        # Tile very wide feature dims in lane-dense chunks (<= 1024 lanes/step).
        feat_block = 128 * _largest_divisor(feat // 128, 8)
    else:
        feat_block = feat
    # f32 working set per batch row: input rows + output rows + stats, 2x buffered.
    per_batch = 4 * feat_block * (rows + extra_rows + 4) * 2
    cap = max(1, _VMEM_BUDGET // max(per_batch, 1))
    if batch > 1:
        cap = min(cap, max(1, batch // min_steps))
    batch_block = _largest_divisor(batch, cap)
    return batch_block, feat_block


def _norm_kernel(tail, eps, seq_len):
    inv_s = 1.0 / float(seq_len)

    def kernel(w_ref, b_ref, x_ref, out_ref, mean_ref, std_ref):
        x = x_ref[...].astype(jnp.float32)              # (BB, S, BD) f32 accum
        # Fused single-pass statistics (population variance, unbiased=False).
        s1 = jnp.sum(x, axis=1, keepdims=True)          # (BB, 1, BD)
        s2 = jnp.sum(x * x, axis=1, keepdims=True)      # (BB, 1, BD)
        mean = s1 * inv_s
        var = jnp.maximum(s2 * inv_s - mean * mean, 0.0)
        std = jnp.sqrt(var + eps)
        # Reciprocal only on the small stats row; big tile gets a broadcast mul.
        inv_std = pl.reciprocal(std)
        w = w_ref[0]                                    # scalars from SMEM
        b = b_ref[0]
        scale = inv_std * w                             # fold affine weight in
        # Tail slice of the resident block ((S - tail) % 8 == 0 -> aligned view).
        xt = x[:, seq_len - tail:, :]                   # (BB, tail, BD)
        out_ref[...] = ((xt - mean) * scale + b).astype(out_ref.dtype)
        mean_ref[...] = mean
        std_ref[...] = std

    return kernel


def _denorm_kernel(eps):
    def kernel(w_ref, b_ref, x_ref, mean_ref, std_ref, out_ref):
        x = x_ref[...].astype(jnp.float32)              # (BB, T, BD)
        w = w_ref[0]
        b = b_ref[0]
        inv_w = 1.0 / (w + eps * eps)                   # one scalar reciprocal
        scale = std_ref[...] * inv_w                    # (BB, 1, BD)
        out_ref[...] = ((x - b) * scale + mean_ref[...]).astype(out_ref.dtype)

    return kernel


def transform_norm(x, affine_weight, affine_bias, tail, eps=EPS):
    """mode='norm': returns (normalized_tail, mean, stdev)."""
    B, S, D = x.shape
    BB, BD = _choose_blocks(B, S, tail, D)
    grid = (B // BB, D // BD)

    smem_spec = pl.BlockSpec(memory_space=pltpu.MemorySpace.SMEM)
    out_shapes = (
        jax.ShapeDtypeStruct((B, tail, D), x.dtype),
        jax.ShapeDtypeStruct((B, 1, D), jnp.float32),
        jax.ShapeDtypeStruct((B, 1, D), jnp.float32),
    )
    return pl.pallas_call(
        _norm_kernel(tail, eps, S),
        out_shape=out_shapes,
        grid_spec=pltpu.PrefetchScalarGridSpec(
            num_scalar_prefetch=0,
            grid=grid,
            in_specs=[
                smem_spec,                                           # affine_weight
                smem_spec,                                           # affine_bias
                pl.BlockSpec((BB, S, BD), lambda i, j: (i, 0, j)),   # x
            ],
            out_specs=(
                pl.BlockSpec((BB, tail, BD), lambda i, j: (i, 0, j)),
                pl.BlockSpec((BB, 1, BD), lambda i, j: (i, 0, j)),
                pl.BlockSpec((BB, 1, BD), lambda i, j: (i, 0, j)),
            ),
        ),
        compiler_params=pltpu.CompilerParams(
            dimension_semantics=("parallel", "parallel")),
    )(affine_weight, affine_bias, x)


def transform_denorm(x, mean, stdev, affine_weight, affine_bias, eps=EPS):
    """mode='denorm': inverse of normalize using stored statistics."""
    B, T, D = x.shape
    BB, BD = _choose_blocks(B, 2 * T, 0, D)   # x in + out, double counted as rows
    grid = (B // BB, D // BD)

    smem_spec = pl.BlockSpec(memory_space=pltpu.MemorySpace.SMEM)
    return pl.pallas_call(
        _denorm_kernel(eps),
        out_shape=jax.ShapeDtypeStruct((B, T, D), x.dtype),
        grid_spec=pltpu.PrefetchScalarGridSpec(
            num_scalar_prefetch=0,
            grid=grid,
            in_specs=[
                smem_spec,                                           # affine_weight
                smem_spec,                                           # affine_bias
                pl.BlockSpec((BB, T, BD), lambda i, j: (i, 0, j)),   # x
                pl.BlockSpec((BB, 1, BD), lambda i, j: (i, 0, j)),   # mean
                pl.BlockSpec((BB, 1, BD), lambda i, j: (i, 0, j)),   # stdev
            ],
            out_specs=pl.BlockSpec((BB, T, BD), lambda i, j: (i, 0, j)),
        ),
        compiler_params=pltpu.CompilerParams(
            dimension_semantics=("parallel", "parallel")),
    )(affine_weight, affine_bias, x, mean, stdev)


if __name__ == "__main__":
    # Deterministic parameter init matching _init_params: ones(1), zeros(1).
    affine_weight = jnp.ones((1,), dtype=jnp.float32)
    affine_bias = jnp.zeros((1,), dtype=jnp.float32)

    # Small shapes consistent with the forward. D=128 keeps the lane axis dense
    # and (S - tail) % 8 == 0 keeps the in-kernel tail slice sublane-aligned.
    B, S, D, tail = 4, 16, 128, 8
    key = jax.random.PRNGKey(0)
    x = jax.random.normal(key, (B, S, D), dtype=jnp.float32)

    # mode='norm'
    y, mean, stdev = transform_norm(x, affine_weight, affine_bias, tail)
    y = jax.block_until_ready(y)

    # mode='denorm' (round-trip on the normalized tail)
    x_rec = transform_denorm(y, mean, stdev, affine_weight, affine_bias)
    x_rec = jax.block_until_ready(x_rec)

    # Plain-JAX reference (matches the PyTorch module semantics).
    mean_ref = jnp.mean(x, axis=1, keepdims=True)
    var_ref = jnp.mean((x - mean_ref) ** 2, axis=1, keepdims=True)
    std_ref = jnp.sqrt(var_ref + EPS)
    y_ref = (x[:, -tail:] - mean_ref) / std_ref * affine_weight[0] + affine_bias[0]
    x_rec_ref = ((y_ref - affine_bias[0]) / (affine_weight[0] + EPS * EPS)
                 ) * std_ref + mean_ref

    assert jnp.allclose(y, y_ref, atol=1e-4, rtol=1e-4)
    assert jnp.allclose(mean, mean_ref, atol=1e-4, rtol=1e-4)
    assert jnp.allclose(stdev, std_ref, atol=1e-4, rtol=1e-4)
    assert jnp.allclose(x_rec, x_rec_ref, atol=1e-4, rtol=1e-4)
    print("KERNEL_OK")
</pallas_src>

<mosaic_0001>
module attributes {stable_mosaic.version = 11 : i64} {
  func.func @kernel(%arg0: i32, %arg1: i32, %arg2: memref<1xf32, #tpu.memory_space<smem>>, %arg3: memref<1xf32, #tpu.memory_space<smem>>, %arg4: memref<2x16x128xf32, #tpu.memory_space<vmem>>, %arg5: memref<2x8x128xf32, #tpu.memory_space<vmem>>, %arg6: memref<2x1x128xf32, #tpu.memory_space<vmem>>, %arg7: memref<2x1x128xf32, #tpu.memory_space<vmem>>) attributes {dimension_semantics = [#tpu.dimension_semantics<parallel>, #tpu.dimension_semantics<parallel>], iteration_bounds = array<i64: 2, 1>, scalar_prefetch = 0 : i64, scratch_operands = 0 : i64, tpu.core_type = #tpu.core_type<tc>, window_params = [{transform_indices = @transform_0, window_bounds = array<i64: 1>}, {transform_indices = @transform_1, window_bounds = array<i64: 1>}, {transform_indices = @transform_2, window_bounds = array<i64: 2, 16, 128>}, {transform_indices = @transform_3, window_bounds = array<i64: 2, 8, 128>}, {transform_indices = @transform_4, window_bounds = array<i64: 2, 1, 128>}, {transform_indices = @transform_5, window_bounds = array<i64: 2, 1, 128>}]} {
    %c0 = arith.constant 0 : index
    %c0_0 = arith.constant 0 : index
    %c0_1 = arith.constant 0 : index
    %0 = vector.load %arg4[%c0, %c0_0, %c0_1] : memref<2x16x128xf32, #tpu.memory_space<vmem>>, vector<2x16x128xf32>
    %cst = arith.constant dense<0.000000e+00> : vector<2x128xf32>
    %1 = vector.multi_reduction <add>, %0, %cst [1] : vector<2x16x128xf32> to vector<2x128xf32>
    %2 = vector.shape_cast %1 : vector<2x128xf32> to vector<2x1x128xf32>
    %3 = arith.mulf %0, %0 : vector<2x16x128xf32>
    %cst_2 = arith.constant dense<0.000000e+00> : vector<2x128xf32>
    %4 = vector.multi_reduction <add>, %3, %cst_2 [1] : vector<2x16x128xf32> to vector<2x128xf32>
    %5 = vector.shape_cast %4 : vector<2x128xf32> to vector<2x1x128xf32>
    %cst_3 = arith.constant 6.250000e-02 : f32
    %6 = vector.broadcast %cst_3 : f32 to vector<2x1x128xf32>
    %7 = arith.mulf %2, %6 : vector<2x1x128xf32>
    %cst_4 = arith.constant 6.250000e-02 : f32
    %8 = vector.broadcast %cst_4 : f32 to vector<2x1x128xf32>
    %9 = arith.mulf %5, %8 : vector<2x1x128xf32>
    %10 = arith.mulf %7, %7 : vector<2x1x128xf32>
    %11 = arith.subf %9, %10 : vector<2x1x128xf32>
    %cst_5 = arith.constant 0.000000e+00 : f32
    %12 = vector.broadcast %cst_5 : f32 to vector<2x1x128xf32>
    %13 = arith.maximumf %11, %12 : vector<2x1x128xf32>
    %cst_6 = arith.constant 9.99999974E-6 : f32
    %14 = vector.broadcast %cst_6 : f32 to vector<2x1x128xf32>
    %15 = arith.addf %13, %14 : vector<2x1x128xf32>
    %16 = math.sqrt %15 : vector<2x1x128xf32>
    %17 = tpu.reciprocal %16 : vector<2x1x128xf32> -> vector<2x1x128xf32>
    %c0_7 = arith.constant 0 : index
    %18 = memref.load %arg2[%c0_7] : memref<1xf32, #tpu.memory_space<smem>>
    %c0_8 = arith.constant 0 : index
    %19 = memref.load %arg3[%c0_8] : memref<1xf32, #tpu.memory_space<smem>>
    %20 = vector.broadcast %18 : f32 to vector<2x1x128xf32>
    %21 = arith.mulf %17, %20 : vector<2x1x128xf32>
    %22 = vector.extract_strided_slice %0 {offsets = [0, 8, 0], sizes = [2, 8, 128], strides = [1, 1, 1]} : vector<2x16x128xf32> to vector<2x8x128xf32>
    %23 = vector.broadcast %7 : vector<2x1x128xf32> to vector<2x8x128xf32>
    %24 = arith.subf %22, %23 : vector<2x8x128xf32>
    %25 = vector.broadcast %21 : vector<2x1x128xf32> to vector<2x8x128xf32>
    %26 = arith.mulf %24, %25 : vector<2x8x128xf32>
    %27 = vector.broadcast %19 : f32 to vector<2x8x128xf32>
    %28 = arith.addf %26, %27 : vector<2x8x128xf32>
    %c0_9 = arith.constant 0 : index
    %c0_10 = arith.constant 0 : index
    %c0_11 = arith.constant 0 : index
    %29 = vector.load %arg5[%c0_9, %c0_10, %c0_11] : memref<2x8x128xf32, #tpu.memory_space<vmem>>, vector<2x8x128xf32>
    tpu.vector_store %arg5[%c0_9, %c0_10, %c0_11], %28 {strides = array<i32>} : memref<2x8x128xf32, #tpu.memory_space<vmem>>, vector<2x8x128xf32>,
    %c0_12 = arith.constant 0 : index
    %c0_13 = arith.constant 0 : index
    %c0_14 = arith.constant 0 : index
    %30 = vector.load %arg6[%c0_12, %c0_13, %c0_14] : memref<2x1x128xf32, #tpu.memory_space<vmem>>, vector<2x1x128xf32>
    tpu.vector_store %arg6[%c0_12, %c0_13, %c0_14], %7 {strides = array<i32>} : memref<2x1x128xf32, #tpu.memory_space<vmem>>, vector<2x1x128xf32>,
    %c0_15 = arith.constant 0 : index
    %c0_16 = arith.constant 0 : index
    %c0_17 = arith.constant 0 : index
    %31 = vector.load %arg7[%c0_15, %c0_16, %c0_17] : memref<2x1x128xf32, #tpu.memory_space<vmem>>, vector<2x1x128xf32>
    tpu.vector_store %arg7[%c0_15, %c0_16, %c0_17], %16 {strides = array<i32>} : memref<2x1x128xf32, #tpu.memory_space<vmem>>, vector<2x1x128xf32>,
    return
  }
  func.func @transform_0(%arg0: i32, %arg1: i32) -> i32 {
    %c0_i32 = arith.constant 0 : i32
    %c0_i32_0 = arith.constant 0 : i32
    return %c0_i32 : i32
  }
  func.func @transform_1(%arg0: i32, %arg1: i32) -> i32 {
    %c0_i32 = arith.constant 0 : i32
    %c0_i32_0 = arith.constant 0 : i32
    return %c0_i32 : i32
  }
  func.func @transform_2(%arg0: i32, %arg1: i32) -> (i32, i32, i32) {
    %c0_i32 = arith.constant 0 : i32
    %c0_i32_0 = arith.constant 0 : i32
    return %arg0, %c0_i32, %arg1 : i32, i32, i32
  }
  func.func @transform_3(%arg0: i32, %arg1: i32) -> (i32, i32, i32) {
    %c0_i32 = arith.constant 0 : i32
    %c0_i32_0 = arith.constant 0 : i32
    return %arg0, %c0_i32, %arg1 : i32, i32, i32
  }
  func.func @transform_4(%arg0: i32, %arg1: i32) -> (i32, i32, i32) {
    %c0_i32 = arith.constant 0 : i32
    %c0_i32_0 = arith.constant 0 : i32
    return %arg0, %c0_i32, %arg1 : i32, i32, i32
  }
  func.func @transform_5(%arg0: i32, %arg1: i32) -> (i32, i32, i32) {
    %c0_i32 = arith.constant 0 : i32
    %c0_i32_0 = arith.constant 0 : i32
    return %arg0, %c0_i32, %arg1 : i32, i32, i32
  }
}

</mosaic_0001>

<llo_original>
// kernel: tpu_custom_call.1
$region0: #{tpu_custom_call.1}
  #allocation0 [shape = 'u32[]', space=smem, size = 0x4, offset = 0x4, fixed_abs, tag = 'smem constant byte address 0x4 - core index']
  #allocation1 [shape = 'u32[72,128]{1,0:T(1,128)}', space=vmem, size = 0x9000, scoped, tag = 'internal scratch']
  #allocation2 [shape = 'f32[1]{0:T(128)S(6)}', space=smem, size = 0x200, scoped, tag = 'scoped memory for tpu_custom_call.1']
  #allocation3 [shape = 'f32[1]{0:T(128)S(6)}', space=smem, size = 0x200, scoped, tag = 'scoped memory for tpu_custom_call.1']
  %s0 = inlined_call_operand.<no memory space> [shape: f32[1], index: 0, kind: input, shape index: {}]
  %s1 = inlined_call_operand.<no memory space> [shape: f32[1], index: 1, kind: input, shape index: {}]
  %s2 = inlined_call_operand.hbm [shape: f32[4,16,128], index: 2, kind: input, shape index: {}]
  %s3 = inlined_call_operand.hbm [shape: f32[4,8,128], index: 3, kind: output, shape index: {0}]
  %s4 = inlined_call_operand.hbm [shape: f32[4,1,128], index: 4, kind: output, shape index: {1}]
  %s5 = inlined_call_operand.hbm [shape: f32[4,1,128], index: 5, kind: output, shape index: {2}]
  %6 = xla_tuple %s3, %s4, %s5
  %s7 = sld [smem:[#allocation0]]
  $region65: #{tpu_custom_call.1} parent=0
    _
  %s9 = ssub.s32 1, %s7
  %s10 = scalar_select 0, %s9, %s7
  %11 = sst [smem:[#allocation2]] %s0
  %12 = sst [smem:[#allocation3]] %s1
  $region1: #{tpu_custom_call.1} parent=0
    #allocation4 [shape = 'u8[32768]{0}', space=vmem, size = 0x8000, scoped, tag = 'input window, operand 2']
    #allocation5 [shape = 's32[2]{0}', space=sflag, size = 0x8, scoped, tag = 'scoped memory for tpu_custom_call.1']
    #allocation6 [shape = 's32[2]{0}', space=sflag, size = 0x8, scoped, tag = 'scoped memory for tpu_custom_call.1']
    #allocation7 [shape = 'u8[16384]{0}', space=vmem, size = 0x4000, scoped, tag = 'output window, operand 0']
    #allocation8 [shape = 'u8[2048]{0}', space=vmem, size = 0x800, scoped, tag = 'output window, operand 1']
    #allocation9 [shape = 's32[2]{0}', space=sflag, size = 0x8, scoped, tag = 'scoped memory for tpu_custom_call.1']
    #allocation10 [shape = 'u8[2048]{0}', space=vmem, size = 0x800, scoped, tag = 'output window, operand 2']
    %13 = vsyncpa [#allocation5], 0
    %s14 = scalar_lea.sflag [#allocation5], 1
    %15 = vsyncpa %s14, 0
    %16 = vsyncpa [#allocation6], 0
    %s17 = scalar_lea.sflag [#allocation6], 1
    %18 = vsyncpa %s17, 0
    %19 = vsyncpa [#allocation9], 0
    %s20 = scalar_lea.sflag [#allocation9], 1
    %21 = vsyncpa %s20, 0
    loop: start=0, step=1, limit=4
    $region2: #{tpu_custom_call.1} parent=1 // loop_pre_header
      _
    $region3: #{tpu_custom_call.1} parent=1 // loop_header
      %s23 = sphi 0, %s27
      %p24 = scmp.ge.s32.totalorder %s23, 4
      %s30 = sphi 0, %s42
      %s31 = sphi 0, %s38
      %s32 = sphi 0, %s30
      %s33 = sphi 0, %s31
      %s34 = sphi 0, %s32
      %s35 = sphi 0, %s33
      %s43 = sphi 0, %s43
      %s45 = sphi 0, %s43
      %s46 = sphi 0, %s45
      %s60 = sphi 0, %s46
      %s64 = sphi 0, %s64
      %s66 = sphi 0, %s64
      %s67 = sphi 0, %s66
      %s81 = sphi 0, %s67
      %s89 = sphi 0, %s91
      %s92 = sphi 0, %s89
      %s93 = sphi 0, %s92
      %s109 = sphi 0, %s93
      %s117 = sphi 0, %s119
      %s120 = sphi 0, %s117
      %s121 = sphi 0, %s120
      %s137 = sphi 0, %s121
      %s145 = sphi 0, %s147
      %s148 = sphi 0, %s145
      %s149 = sphi 0, %s148
      %s165 = sphi 0, %s149
      %s173 = sphi 0, %s175
      %s176 = sphi 0, %s173
      %s177 = sphi 0, %s176
      %s193 = sphi 0, %s177
    $region4: #{tpu_custom_call.1} parent=1 // loop_header_branch
      %26 = sbr.rel (%p24) target = $region8
    $region5: #{tpu_custom_call.1} parent=1 // loop_body
      %s28 = ssub.s32 %s23, 1
      %s29 = ssub.s32 %s23, 2
      %s36 = sadd.s32 1, %s31
      %p37 = scmp.ge.s32.totalorder %s36, 1
      %s38 = scalar_select %p37, 0, %s36
      %s39 = sadd.s32 1, %s30
      %s40 = scalar_select %p37, %s39, %s30
      %p41 = scmp.ge.s32.totalorder %s40, 2
      %s42 = scalar_select %p41, 0, %s40
      %s44 = sadd.s32 %s43, 1
      %p47 = scmp.eq.s32.totalorder %s23, 1
      %p48 = scmp.ne.s32.totalorder %s43, %s45
      %p49 = scmp.eq.s32.totalorder %s23, 0
      %p50 = por %p48, %p49
      %p51 = scmp.ne.s32.totalorder %s43, %s45
      %p52 = scmp.eq.s32.totalorder %s28, 1
      %p53 = por %p51, %p52
      %p54 = scmp.ne.s32.totalorder %s45, %s46
      %p55 = scmp.eq.s32.totalorder %s28, 0
      %p56 = por %p54, %p55
      %p57 = scmp.ne.s32.totalorder %s45, %s46
      %p58 = scmp.eq.s32.totalorder %s29, 1
      %p59 = por %p57, %p58
      %p61 = scmp.ne.s32.totalorder %s46, %s60
      %p62 = scmp.eq.s32.totalorder %s29, 0
      %p63 = por %p61, %p62
      %s65 = sadd.s32 %s64, 1
      %p68 = scmp.eq.s32.totalorder %s23, 1
      %p69 = scmp.ne.s32.totalorder %s64, %s66
      %p70 = scmp.eq.s32.totalorder %s23, 0
      %p71 = por %p69, %p70
      %p72 = scmp.ne.s32.totalorder %s64, %s66
      %p73 = scmp.eq.s32.totalorder %s28, 1
      %p74 = por %p72, %p73
      %p75 = scmp.ne.s32.totalorder %s66, %s67
      %p76 = scmp.eq.s32.totalorder %s28, 0
      %p77 = por %p75, %p76
      %p78 = scmp.ne.s32.totalorder %s66, %s67
      %p79 = scmp.eq.s32.totalorder %s29, 1
      %p80 = por %p78, %p79
      %p82 = scmp.ne.s32.totalorder %s67, %s81
      %p83 = scmp.eq.s32.totalorder %s29, 0
      %p84 = por %p82, %p83
      %s85 = ssub.s32 %s30, %s42
      %s86 = ssub.s32 %s31, %s38
      %s87 = sor.u32 %s85, %s86
      %p88 = scmp.eq.s32.totalorder %s87, 0
      %s90 = sadd.s32 %s89, 1
      %s91 = scalar_select %p88, %s89, %s90
      %p94 = pneg %p88
      %p95 = scmp.eq.s32.totalorder %s23, 1
      %p96 = por %p94, %p95
      %p97 = scmp.ne.s32.totalorder %s89, %s92
      %p98 = scmp.eq.s32.totalorder %s23, 0
      %p99 = por %p97, %p98
      %p100 = scmp.ne.s32.totalorder %s89, %s92
      %p101 = scmp.eq.s32.totalorder %s28, 1
      %p102 = por %p100, %p101
      %p103 = scmp.ne.s32.totalorder %s92, %s93
      %p104 = scmp.eq.s32.totalorder %s28, 0
      %p105 = por %p103, %p104
      %p106 = scmp.ne.s32.totalorder %s92, %s93
      %p107 = scmp.eq.s32.totalorder %s29, 1
      %p108 = por %p106, %p107
      %p110 = scmp.ne.s32.totalorder %s93, %s109
      %p111 = scmp.eq.s32.totalorder %s29, 0
      %p112 = por %p110, %p111
      %s113 = ssub.s32 %s30, %s42
      %s114 = ssub.s32 %s31, %s38
      %s115 = sor.u32 %s113, %s114
      %p116 = scmp.eq.s32.totalorder %s115, 0
      %s118 = sadd.s32 %s117, 1
      %s119 = scalar_select %p116, %s117, %s118
      %p122 = pneg %p116
      %p123 = scmp.eq.s32.totalorder %s23, 1
      %p124 = por %p122, %p123
      %p125 = scmp.ne.s32.totalorder %s117, %s120
      %p126 = scmp.eq.s32.totalorder %s23, 0
      %p127 = por %p125, %p126
      %p128 = scmp.ne.s32.totalorder %s117, %s120
      %p129 = scmp.eq.s32.totalorder %s28, 1
      %p130 = por %p128, %p129
      %p131 = scmp.ne.s32.totalorder %s120, %s121
      %p132 = scmp.eq.s32.totalorder %s28, 0
      %p133 = por %p131, %p132
      %p134 = scmp.ne.s32.totalorder %s120, %s121
      %p135 = scmp.eq.s32.totalorder %s29, 1
      %p136 = por %p134, %p135
      %p138 = scmp.ne.s32.totalorder %s121, %s137
      %p139 = scmp.eq.s32.totalorder %s29, 0
      %p140 = por %p138, %p139
      %s141 = ssub.s32 %s30, %s42
      %s142 = ssub.s32 %s31, %s38
      %s143 = sor.u32 %s141, %s142
      %p144 = scmp.eq.s32.totalorder %s143, 0
      %s146 = sadd.s32 %s145, 1
      %s147 = scalar_select %p144, %s145, %s146
      %p150 = pneg %p144
      %p151 = scmp.eq.s32.totalorder %s23, 1
      %p152 = por %p150, %p151
      %p153 = scmp.ne.s32.totalorder %s145, %s148
      %p154 = scmp.eq.s32.totalorder %s23, 0
      %p155 = por %p153, %p154
      %p156 = scmp.ne.s32.totalorder %s145, %s148
      %p157 = scmp.eq.s32.totalorder %s28, 1
      %p158 = por %p156, %p157
      %p159 = scmp.ne.s32.totalorder %s148, %s149
      %p160 = scmp.eq.s32.totalorder %s28, 0
      %p161 = por %p159, %p160
      %p162 = scmp.ne.s32.totalorder %s148, %s149
      %p163 = scmp.eq.s32.totalorder %s29, 1
      %p164 = por %p162, %p163
      %p166 = scmp.ne.s32.totalorder %s149, %s165
      %p167 = scmp.eq.s32.totalorder %s29, 0
      %p168 = por %p166, %p167
      %s169 = ssub.s32 %s30, %s42
      %s170 = ssub.s32 %s31, %s38
      %s171 = sor.u32 %s169, %s170
      %p172 = scmp.eq.s32.totalorder %s171, 0
      %s174 = sadd.s32 %s173, 1
      %s175 = scalar_select %p172, %s173, %s174
      %p178 = pneg %p172
      %p179 = scmp.eq.s32.totalorder %s23, 1
      %p180 = por %p178, %p179
      %p181 = scmp.ne.s32.totalorder %s173, %s176
      %p182 = scmp.eq.s32.totalorder %s23, 0
      %p183 = por %p181, %p182
      %p184 = scmp.ne.s32.totalorder %s173, %s176
      %p185 = scmp.eq.s32.totalorder %s28, 1
      %p186 = por %p184, %p185
      %p187 = scmp.ne.s32.totalorder %s176, %s177
      %p188 = scmp.eq.s32.totalorder %s28, 0
      %p189 = por %p187, %p188
      %p190 = scmp.ne.s32.totalorder %s176, %s177
      %p191 = scmp.eq.s32.totalorder %s29, 1
      %p192 = por %p190, %p191
      %p194 = scmp.ne.s32.totalorder %s177, %s193
      %p195 = scmp.eq.s32.totalorder %s29, 0
      %p196 = por %p194, %p195
      %p197 = scmp.le.s32.totalorder 1, %s23
      %p198 = scmp.lt.s32.totalorder %s23, 3
      %p199 = pnand %p197, %p198
      %p200 = pneg %p199
      // Predicated region
      $region9: #{tpu_custom_call.1} parent=5 // pred_check
        _
      $region10: #{tpu_custom_call.1} parent=5 // pred_check_branch
        %202 = sbr.rel (%p199) target = $region12
      $region11: #{tpu_custom_call.1} parent=5 // pred_region
        %s203 = ssub.s32 %s23, 1
        // Predicated region
        $region13: #{tpu_custom_call.1} parent=11 // pred_check
          %p204 = pneg %p56
        $region14: #{tpu_custom_call.1} parent=11 // pred_check_branch
          %206 = sbr.rel (%p204) target = $region16
        $region15: #{tpu_custom_call.1} parent=11 // pred_region
          _
        $region16: #{tpu_custom_call.1} parent=11 // pred_fallthru
          _
        // Predicated region
        $region17: #{tpu_custom_call.1} parent=11 // pred_check
          %p207 = pneg %p77
        $region18: #{tpu_custom_call.1} parent=11 // pred_check_branch
          %209 = sbr.rel (%p207) target = $region20
        $region19: #{tpu_custom_call.1} parent=11 // pred_region
          _
        $region20: #{tpu_custom_call.1} parent=11 // pred_fallthru
          _
      $region12: #{tpu_custom_call.1} parent=5 // pred_fallthru
        _
      %p210 = scmp.lt.s32.totalorder %s23, 2
      // Predicated region
      $region21: #{tpu_custom_call.1} parent=5 // pred_check
        %p211 = pneg %p210
      $region22: #{tpu_custom_call.1} parent=5 // pred_check_branch
        %213 = sbr.rel (%p211) target = $region24
      $region23: #{tpu_custom_call.1} parent=5 // pred_region
        // Predicated region
        $region25: #{tpu_custom_call.1} parent=23 // pred_check
          %p214 = pneg %p99
        $region26: #{tpu_custom_call.1} parent=23 // pred_check_branch
          %216 = sbr.rel (%p214) target = $region28
        $region27: #{tpu_custom_call.1} parent=23 // pred_region
          %s217 = sand.u32 %s89, 1
          %s218 = scalar_lea.sflag [#allocation5], %s217
          %s219 = sand.u32 %s89, 1
          %s220 = smul.addr %s219, 32
          %s221 = scalar_lea.vmem [#allocation4], %s220
          %s222 = smul.u32 2, %s30
          %224 = vsyncadd %s218, 0
          %s225 = smul.addr %s222, 2
          %s226 = sadd.s32 %s31, %s225
          %s227 = smul.addr %s226, 8
          %s228 = scalar_lea.hbm %s2, %s227
          %s229 = sshll.u32 %s228, 4
          %s230 = int_to_ptr.hbm [resolvable:$true] %s229
          %s231 = sshll.u32 %s221, 4
          %s232 = int_to_ptr.vmem [resolvable:$true] %s231
          %237 = dma.hbm_to_vmem [thread:$0]  %s230, 512, %s232, %s218, 128, 128, 8
        $region28: #{tpu_custom_call.1} parent=23 // pred_fallthru
          _
      $region24: #{tpu_custom_call.1} parent=5 // pred_fallthru
        _
      %p238 = scmp.le.s32.totalorder 1, %s23
      %p239 = scmp.lt.s32.totalorder %s23, 3
      %p240 = pnand %p238, %p239
      %p241 = pneg %p240
      // Predicated region
      $region29: #{tpu_custom_call.1} parent=5 // pred_check
        _
      $region30: #{tpu_custom_call.1} parent=5 // pred_check_branch
        %243 = sbr.rel (%p240) target = $region32
      $region31: #{tpu_custom_call.1} parent=5 // pred_region
        %s244 = ssub.s32 %s23, 1
        %s245 = sand.u32 %s92, 1
        %s246 = scalar_lea.sflag [#allocation5], %s245
        %s247 = sand.u32 %s92, 1
        %s248 = smul.addr %s247, 32
        %s249 = scalar_lea.vmem [#allocation4], %s248
        // Predicated region
        $region33: #{tpu_custom_call.1} parent=31 // pred_check
          %p250 = pneg %p105
        $region34: #{tpu_custom_call.1} parent=31 // pred_check_branch
          %252 = sbr.rel (%p250) target = $region36
        $region35: #{tpu_custom_call.1} parent=31 // pred_region
          %254 = dma.done %s246, 512
        $region36: #{tpu_custom_call.1} parent=31 // pred_fallthru
          _
        %p255 = pneg %p56
        %p256 = pneg %p53
        %p257 = pneg %p77
        %p258 = pneg %p74
        %s259 = sand.u32 %s92, 1
        %s260 = scalar_lea.sflag [#allocation5], %s259
        %s261 = sand.u32 %s92, 1
        %s262 = smul.addr %s261, 32
        %s263 = scalar_lea.vmem [#allocation4], %s262
        %p264 = pneg %p105
        %p265 = pneg %p102
        %p266 = pneg %p133
        %p267 = pneg %p130
        %s268 = sand.u32 %s120, 1
        %s269 = scalar_lea.sflag [#allocation6], %s268
        %s270 = sand.u32 %s120, 1
        %s271 = smul.addr %s270, 16
        %s272 = scalar_lea.vmem [#allocation7], %s271
        %p273 = pneg %p161
        %p274 = pneg %p158
        %s275 = sand.u32 %s28, 1
        %s276 = scalar_lea.sflag [#allocation9], %s275
        %s277 = sand.u32 %s148, 1
        %s278 = smul.addr %s277, 2
        %s279 = scalar_lea.vmem [#allocation8], %s278
        %p280 = pneg %p189
        %p281 = pneg %p186
        %s282 = sand.u32 %s28, 1
        %s283 = scalar_lea.sflag [#allocation9], %s282
        %s284 = sand.u32 %s176, 1
        %s285 = smul.addr %s284, 2
        %s286 = scalar_lea.vmem [#allocation10], %s285
        %s287 = smul.u32 2, %s32
        %s288 = smul.u32 2, %s32
        %s289 = smul.u32 2, %s32
        %s290 = smul.u32 2, %s32
        %v291 = vld [vmem:[%s249] sm:$0xff]
        %v292 = vld [vmem:[%s249 + $0x8] sm:$0xff]
        %v293 = vld [vmem:[%s249 + $0x10] sm:$0xff]
        %v294 = vld [vmem:[%s249 + $0x18] sm:$0xff]
        %v295 = vadd.f32 %v291, %v292
        %v296 = vrot.slane %v295, 4
        %v297 = vadd.f32 %v295, %v296
        %v298 = vrot.slane %v297, 2
        %v299 = vadd.f32 %v297, %v298
        %v300 = vrot.slane %v299, 1
        %v301 = vadd.f32 %v299, %v300
        %v302 = vadd.f32 %v293, %v294
        %v303 = vrot.slane %v302, 4
        %v304 = vadd.f32 %v302, %v303
        %v305 = vrot.slane %v304, 2
        %v306 = vadd.f32 %v304, %v305
        %v307 = vrot.slane %v306, 1
        %v308 = vadd.f32 %v306, %v307
        %v309 = vmul.f32 %v291, %v291
        %v310 = vmul.f32 %v292, %v292
        %v311 = vmul.f32 %v293, %v293
        %v312 = vmul.f32 %v294, %v294
        %v313 = vadd.f32 %v309, %v310
        %v314 = vrot.slane %v313, 4
        %v315 = vadd.f32 %v313, %v314
        %v316 = vrot.slane %v315, 2
        %v317 = vadd.f32 %v315, %v316
        %v318 = vrot.slane %v317, 1
        %v319 = vadd.f32 %v317, %v318
        %v320 = vadd.f32 %v311, %v312
        %v321 = vrot.slane %v320, 4
        %v322 = vadd.f32 %v320, %v321
        %v323 = vrot.slane %v322, 2
        %v324 = vadd.f32 %v322, %v323
        %v325 = vrot.slane %v324, 1
        %v326 = vadd.f32 %v324, %v325
        %v327 = vmul.f32 %v301, 0.0625
        %v328 = vmul.f32 %v308, 0.0625
        %v329 = vmul.f32 %v319, 0.0625
        %v330 = vmul.f32 %v326, 0.0625
        %v331 = vmul.f32 %v327, %v327
        %v332 = vmul.f32 %v328, %v328
        %v333 = vsub.f32 %v329, %v331
        %v334 = vsub.f32 %v330, %v332
        %v335 = vmax.f32 %v333, 0.0
        %v336 = vmax.f32 %v334, 0.0
        %v337 = vadd.f32 %v335, 1e-05
        %v338 = vadd.f32 %v336, 1e-05
        %v339 = vrsqrt.pop %v337
        %v340 = vmul.f32 %v339, %v337
        %v341 = vmul.f32 %v340, %v339
        %v342 = vmul.f32 0.5, %v341
        %v343 = vsub.f32 1.5, %v342
        %v344 = vmul.f32 %v339, %v343
        %v345 = vmul.f32 %v337, %v344
        %vm346 = vcmp.eq.f32.partialorder %v337, inf
        %v347 = vsel %vm346, %v337, %v345
        %vm348 = vcmp.eq.f32.partialorder %v337, 0.0
        %v349 = vand.u32 %v337, 2147483648
        %v350 = vsel %vm348, %v349, %v347
        %v351 = vrsqrt.pop %v338
        %v352 = vmul.f32 %v351, %v338
        %v353 = vmul.f32 %v352, %v351
        %v354 = vmul.f32 0.5, %v353
        %v355 = vsub.f32 1.5, %v354
        %v356 = vmul.f32 %v351, %v355
        %v357 = vmul.f32 %v338, %v356
        %vm358 = vcmp.eq.f32.partialorder %v338, inf
        %v359 = vsel %vm358, %v338, %v357
        %vm360 = vcmp.eq.f32.partialorder %v338, 0.0
        %v361 = vand.u32 %v338, 2147483648
        %v362 = vsel %vm360, %v361, %v359
        %v363 = vrcp.pop %v350
        %v364 = vmul.f32 %v350, %v363
        %v365 = vsub.f32 1.0, %v364
        %v366 = vmul.f32 %v363, %v365
        %v367 = vadd.f32 %v363, %v366
        %vm368 = vweird.f32 %v350
        %vm369 = vweird.f32 %v363
        %vm370 = vmor %vm368, %vm369
        %v371 = vsel %vm370, %v363, %v367
        %v372 = vand.u32 2147483647, %v350
        %vm373 = vcmp.eq.f32.partialorder %v372, 8.507059e+37
        %v374 = vand.u32 %v350, 2147483648
        %v375 = vor.u32 1.1754944e-38, %v374
        %v376 = vsel %vm373, %v375, %v371
        %v377 = vrcp.pop %v362
        %v378 = vmul.f32 %v362, %v377
        %v379 = vsub.f32 1.0, %v378
        %v380 = vmul.f32 %v377, %v379
        %v381 = vadd.f32 %v377, %v380
        %vm382 = vweird.f32 %v362
        %vm383 = vweird.f32 %v377
        %vm384 = vmor %vm382, %vm383
        %v385 = vsel %vm384, %v377, %v381
        %v386 = vand.u32 2147483647, %v362
        %vm387 = vcmp.eq.f32.partialorder %v386, 8.507059e+37
        %v388 = vand.u32 %v362, 2147483648
        %v389 = vor.u32 1.1754944e-38, %v388
        %v390 = vsel %vm387, %v389, %v385
        %s391 = sld [smem:[#allocation2]]
        %s392 = sld [smem:[#allocation3]]
        %v393 = vstv %s391
        %v394 = vmul.f32 %v376, %v393
        %v395 = vmul.f32 %v390, %v393
        %v396 = vsub.f32 %v292, %v327
        %v397 = vsub.f32 %v294, %v328
        %v398 = vmul.f32 %v396, %v394
        %v399 = vmul.f32 %v397, %v395
        %v400 = vstv %s392
        %v401 = vadd.f32 %v398, %v400
        %v402 = vadd.f32 %v399, %v400
        %403 = vst [vmem:[%s272] sm:$0xff] %v401
        %404 = vst [vmem:[%s272 + $0x8] sm:$0xff] %v402
        %405 = vst [vmem:[%s279] sm:$0x1] %v327
        %406 = vst [vmem:[%s279 + $0x1] sm:$0x1] %v328
        %407 = vst [vmem:[%s286] sm:$0x1] %v350
        %408 = vst [vmem:[%s286 + $0x1] sm:$0x1] %v362
        %s409 = sand.u32 %s120, 1
        %s410 = scalar_lea.sflag [#allocation6], %s409
        %s411 = sand.u32 %s120, 1
        %s412 = smul.addr %s411, 16
        %s413 = scalar_lea.vmem [#allocation7], %s412
        %s414 = sand.u32 %s28, 1
        %s415 = scalar_lea.sflag [#allocation9], %s414
        %s416 = sand.u32 %s148, 1
        %s417 = smul.addr %s416, 2
        %s418 = scalar_lea.vmem [#allocation8], %s417
        %s419 = sand.u32 %s28, 1
        %s420 = scalar_lea.sflag [#allocation9], %s419
        %s421 = sand.u32 %s176, 1
        %s422 = smul.addr %s421, 2
        %s423 = scalar_lea.vmem [#allocation10], %s422
        // Predicated region
        $region37: #{tpu_custom_call.1} parent=31 // pred_check
          %p424 = pneg %p130
        $region38: #{tpu_custom_call.1} parent=31 // pred_check_branch
          %426 = sbr.rel (%p424) target = $region40
        $region39: #{tpu_custom_call.1} parent=31 // pred_region
          %s427 = smul.u32 2, %s32
          %429 = vsyncadd %s410, 0
          %s430 = sadd.s32 %s33, %s427
          %s431 = smul.addr %s430, 8
          %s432 = scalar_lea.hbm %s3, %s431
          %s433 = sshll.u32 %s413, 4
          %s434 = int_to_ptr.vmem [resolvable:$true] %s433
          %s435 = sshll.u32 %s432, 4
          %s436 = int_to_ptr.hbm [resolvable:$true] %s435
          %441 = dma.vmem_to_hbm [thread:$0]  %s434, 256, %s436, %s410, 128, 128, 8
        $region40: #{tpu_custom_call.1} parent=31 // pred_fallthru
          _
        // Predicated region
        $region41: #{tpu_custom_call.1} parent=31 // pred_check
          %p442 = pneg %p158
        $region42: #{tpu_custom_call.1} parent=31 // pred_check_branch
          %444 = sbr.rel (%p442) target = $region44
        $region43: #{tpu_custom_call.1} parent=31 // pred_region
          %s445 = smul.u32 2, %s32
          %447 = vsyncadd %s415, 0
          %s448 = sadd.s32 %s33, %s445
          %s449 = scalar_lea.hbm %s4, %s448
          %s450 = sshll.u32 %s418, 4
          %s451 = int_to_ptr.vmem [resolvable:$true] %s450
          %s452 = sshll.u32 %s449, 4
          %s453 = int_to_ptr.hbm [resolvable:$true] %s452
          %458 = dma.vmem_to_hbm [thread:$0]  %s451, 32, %s453, %s415, 16, 16, 1
        $region44: #{tpu_custom_call.1} parent=31 // pred_fallthru
          _
        // Predicated region
        $region45: #{tpu_custom_call.1} parent=31 // pred_check
          %p459 = pneg %p186
        $region46: #{tpu_custom_call.1} parent=31 // pred_check_branch
          %461 = sbr.rel (%p459) target = $region48
        $region47: #{tpu_custom_call.1} parent=31 // pred_region
          %s462 = smul.u32 2, %s32
          %464 = vsyncadd %s420, 0
          %s465 = sadd.s32 %s33, %s462
          %s466 = scalar_lea.hbm %s5, %s465
          %s467 = sshll.u32 %s423, 4
          %s468 = int_to_ptr.vmem [resolvable:$true] %s467
          %s469 = sshll.u32 %s466, 4
          %s470 = int_to_ptr.hbm [resolvable:$true] %s469
          %475 = dma.vmem_to_hbm [thread:$0]  %s468, 32, %s470, %s420, 16, 16, 1
        $region48: #{tpu_custom_call.1} parent=31 // pred_fallthru
          _
      $region32: #{tpu_custom_call.1} parent=5 // pred_fallthru
        _
      %p476 = scmp.le.s32.totalorder 2, %s23
      // Predicated region
      $region49: #{tpu_custom_call.1} parent=5 // pred_check
        %p477 = pneg %p476
      $region50: #{tpu_custom_call.1} parent=5 // pred_check_branch
        %479 = sbr.rel (%p477) target = $region52
      $region51: #{tpu_custom_call.1} parent=5 // pred_region
        %s480 = ssub.s32 %s23, 2
        // Predicated region
        $region53: #{tpu_custom_call.1} parent=51 // pred_check
          %p481 = pneg %p136
        $region54: #{tpu_custom_call.1} parent=51 // pred_check_branch
          %483 = sbr.rel (%p481) target = $region56
        $region55: #{tpu_custom_call.1} parent=51 // pred_region
          %s484 = sand.u32 %s121, 1
          %s485 = scalar_lea.sflag [#allocation6], %s484
          %s486 = sand.u32 %s121, 1
          %s487 = smul.addr %s486, 16
          %s488 = scalar_lea.vmem [#allocation7], %s487
          %490 = dma.done %s485, 256
        $region56: #{tpu_custom_call.1} parent=51 // pred_fallthru
          _
        // Predicated region
        $region57: #{tpu_custom_call.1} parent=51 // pred_check
          %p491 = pneg %p164
        $region58: #{tpu_custom_call.1} parent=51 // pred_check_branch
          %493 = sbr.rel (%p491) target = $region60
        $region59: #{tpu_custom_call.1} parent=51 // pred_region
          %s494 = sand.u32 %s29, 1
          %s495 = scalar_lea.sflag [#allocation9], %s494
          %s496 = sand.u32 %s149, 1
          %s497 = smul.addr %s496, 2
          %s498 = scalar_lea.vmem [#allocation8], %s497
          %500 = dma.done %s495, 32
        $region60: #{tpu_custom_call.1} parent=51 // pred_fallthru
          _
        // Predicated region
        $region61: #{tpu_custom_call.1} parent=51 // pred_check
          %p501 = pneg %p192
        $region62: #{tpu_custom_call.1} parent=51 // pred_check_branch
          %503 = sbr.rel (%p501) target = $region64
        $region63: #{tpu_custom_call.1} parent=51 // pred_region
          %s504 = sand.u32 %s29, 1
          %s505 = scalar_lea.sflag [#allocation9], %s504
          %s506 = sand.u32 %s177, 1
          %s507 = smul.addr %s506, 2
          %s508 = scalar_lea.vmem [#allocation10], %s507
          %510 = dma.done %s505, 32
        $region64: #{tpu_custom_call.1} parent=51 // pred_fallthru
          _
      $region52: #{tpu_custom_call.1} parent=5 // pred_fallthru
        _
    $region6: #{tpu_custom_call.1} parent=1 // loop_footer
      %s27 = sadd.s32 1, %s23
    $region7: #{tpu_custom_call.1} parent=1 // loop_footer_branch
      %22 = sbr.rel target = $region3
    $region8: #{tpu_custom_call.1} parent=1 // loop_exit
      _
    %511 = vsyncpa [#allocation5], 1
    %s512 = scalar_lea.sflag [#allocation5], 1
    %513 = vsyncpa %s512, 1
    %514 = vsyncpa [#allocation6], 1
    %s515 = scalar_lea.sflag [#allocation6], 1
    %516 = vsyncpa %s515, 1
    %517 = vsyncpa [#allocation9], 1
    %s518 = scalar_lea.sflag [#allocation9], 1
    %519 = vsyncpa %s518, 1

</llo_original>
